<compile_context>
chip_gen: v7x
topology: tpu7x:2x2x1
jax: 0.10.0
libtpu: 0.0.40
codegen_flags: <defaults>
</compile_context>

<pallas_src>
import math
import functools

import jax
import jax.numpy as jnp
from jax import lax
from jax.experimental import pallas as pl
from jax.experimental.pallas import tpu as pltpu


def _make_kernel(n_heads: int, compute_dtype):
    def kernel(x_ref, wqkv_ref, bqkv_ref, wp_ref, bp_ref, o_ref, attn_ref):
        Bb, T, C = x_ref.shape
        D = C // n_heads
        M = Bb * T

        # ---- fused Q/K/V projection: one (M, C) @ (C, 3C) MXU call ---------
        x = x_ref[...].reshape(M, C).astype(compute_dtype)
        qkv = jnp.dot(x, wqkv_ref[...], preferred_element_type=jnp.float32)
        qkv = qkv + bqkv_ref[...]                    # (M, 3C), f32 accumulation
        q = qkv[:, :C]                               # already scaled by 1/sqrt(D)
        k = qkv[:, C:2 * C]
        v = qkv[:, 2 * C:].astype(compute_dtype)

        # ---- additive causal mask, built once per grid step -----------------
        row = lax.broadcasted_iota(jnp.int32, (T, T), 0)
        col = lax.broadcasted_iota(jnp.int32, (T, T), 1)
        neg_mask = jnp.where(row >= col, 0.0, -1e30).astype(jnp.float32)

        # ---- per (batch-row, head) attention; results go into scratch slab --
        for b in range(Bb):                          # static unroll (small Bb)
            r0 = b * T
            for h in range(n_heads):
                c0 = h * D
                qh = q[r0:r0 + T, c0:c0 + D].astype(compute_dtype)   # (T, D)
                kh = k[r0:r0 + T, c0:c0 + D].astype(compute_dtype)   # (T, D)
                vh = v[r0:r0 + T, c0:c0 + D]                         # (T, D)

                # q @ k^T via contraction on the shared D axis (no transpose).
                s = jnp.einsum('td,sd->ts', qh, kh,
                               preferred_element_type=jnp.float32)
                s = s + neg_mask                                     # (T, T)

                # softmax in f32; divide via EUP approx reciprocal.
                m = jnp.max(s, axis=-1, keepdims=True)
                p = jnp.exp(s - m)
                denom = jnp.sum(p, axis=-1, keepdims=True)
                p = p * pl.reciprocal(denom, approx=True)

                attn_ref[r0:r0 + T, c0:c0 + D] = jnp.dot(
                    p.astype(compute_dtype), vh,
                    preferred_element_type=jnp.float32).astype(attn_ref.dtype)

        # ---- output projection ----------------------------------------------
        out = jnp.dot(attn_ref[...], wp_ref[...],
                      preferred_element_type=jnp.float32) + bp_ref[...]
        o_ref[...] = out.reshape(Bb, T, C).astype(o_ref.dtype)

    return kernel


def _pick_block_b(B: int, T: int, C: int) -> int:
    """Batch rows per grid step: amortize per-step overhead, keep >= 2 steps."""
    budget = 2 * 2**20                   # ~2 MiB of per-step activations
    per_row = T * C * 4 * 8              # x/qkv/q/k/v/attn/out + margin (f32)
    bb = max(1, min(B, budget // max(per_row, 1)))
    while B % bb:
        bb -= 1
    if bb == B and B > 1:                # keep >= 2 grid steps (v7x: 2 TCs)
        bb = max(1, B // 2)
        while B % bb:
            bb -= 1
    return bb


@functools.partial(jax.jit, static_argnames=("n_heads", "compute_dtype"))
def masked_causal_attention(x, wq, bq, wk, bk, wv, bv, wp, bp, *,
                            n_heads, compute_dtype=jnp.bfloat16):
    B, T, C = x.shape
    D = C // n_heads
    scale = 1.0 / math.sqrt(D)

    # Wrapper-side (one-time, weights are static) preparation:
    #   pre-transpose to (in, out), fuse Q/K/V into one (C, 3C) weight,
    #   fold the 1/sqrt(D) scale into the Q weight & bias, cast for the MXU.
    wqkv = jnp.concatenate([wq.T * scale, wk.T, wv.T], axis=1).astype(compute_dtype)
    bqkv = jnp.concatenate([bq * scale, bk, bv], axis=1).astype(jnp.float32)
    wp_t = wp.T.astype(compute_dtype)
    bp_f = bp.astype(jnp.float32)

    Bb = _pick_block_b(B, T, C)
    kernel = _make_kernel(n_heads, compute_dtype)

    x_spec = pl.BlockSpec((Bb, T, C), lambda i: (i, 0, 0))
    o_spec = pl.BlockSpec((Bb, T, C), lambda i: (i, 0, 0))
    wqkv_spec = pl.BlockSpec((C, 3 * C), lambda i: (0, 0))
    bqkv_spec = pl.BlockSpec((1, 3 * C), lambda i: (0, 0))
    wp_spec = pl.BlockSpec((C, C), lambda i: (0, 0))
    bp_spec = pl.BlockSpec((1, C), lambda i: (0, 0))

    # Rough VMEM footprint (double-buffered blocks + scratch + activations);
    # only raise the scoped limit when the default would not cover it.
    itemsize = jnp.dtype(compute_dtype).itemsize
    est = (2 * Bb * T * C * 4 * 2                      # x + out blocks (dbl-buf)
           + 2 * (C * 3 * C + C * C) * itemsize        # fused qkv + proj weights
           + 2 * (3 * C + C) * 4                       # biases
           + Bb * T * C * itemsize                     # attn scratch slab
           + Bb * T * 3 * C * 4 * 2                    # qkv + q/k/v temporaries
           + (T * T) * 4 * 4)                          # scores / softmax temps
    compiler_kwargs = dict(dimension_semantics=("parallel",))
    if est > 16 * 2**20:
        compiler_kwargs["vmem_limit_bytes"] = min(int(est), 64 * 2**20)

    return pl.pallas_call(
        kernel,
        out_shape=jax.ShapeDtypeStruct((B, T, C), x.dtype),
        grid_spec=pltpu.PrefetchScalarGridSpec(
            num_scalar_prefetch=0,
            grid=(B // Bb,),
            in_specs=[x_spec, wqkv_spec, bqkv_spec, wp_spec, bp_spec],
            out_specs=o_spec,
            scratch_shapes=[pltpu.VMEM((Bb * T, C), compute_dtype)],
        ),
        compiler_params=pltpu.CompilerParams(**compiler_kwargs),
    )(x, wqkv, bqkv, wp_t, bp_f)


def _reference(x, wq, bq, wk, bk, wv, bv, wp, bp, n_heads):
    """Pure-JAX f32 reference mirroring the PyTorch forward (eval mode)."""
    B, T, C = x.shape
    D = C // n_heads
    q = (x @ wq.T + bq[0]).reshape(B, T, n_heads, D).transpose(0, 2, 1, 3)
    k = (x @ wk.T + bk[0]).reshape(B, T, n_heads, D).transpose(0, 2, 1, 3)
    v = (x @ wv.T + bv[0]).reshape(B, T, n_heads, D).transpose(0, 2, 1, 3)
    w = q @ k.transpose(0, 1, 3, 2) / math.sqrt(D)
    mask = jnp.tril(jnp.ones((T, T)))[None, None]
    w = jnp.where(mask == 0, -jnp.inf, w)
    w = jax.nn.softmax(w, axis=-1)
    a = (w @ v).transpose(0, 2, 1, 3).reshape(B, T, C)
    return a @ wp.T + bp[0]


if __name__ == "__main__":
    # Small shapes consistent with the module: B=2, T=8, h_dim=32, n_heads=2
    B, T, h_dim, n_heads = 2, 8, 32, 2

    key = jax.random.PRNGKey(0)
    ks = jax.random.split(key, 9)
    bound = 1.0 / math.sqrt(h_dim)   # PyTorch nn.Linear default init range

    def lin(kw, kb):
        w = jax.random.uniform(kw, (h_dim, h_dim), jnp.float32, -bound, bound)
        b = jax.random.uniform(kb, (1, h_dim), jnp.float32, -bound, bound)
        return w, b

    wq, bq = lin(ks[0], ks[1])
    wk, bk = lin(ks[2], ks[3])
    wv, bv = lin(ks[4], ks[5])
    wp, bp = lin(ks[6], ks[7])
    x = jax.random.normal(ks[8], (B, T, h_dim), jnp.float32)

    ref = _reference(x, wq, bq, wk, bk, wv, bv, wp, bp, n_heads)

    # Default (bf16 MXU inputs, f32 accumulation & softmax).
    out_bf16 = masked_causal_attention(x, wq, bq, wk, bk, wv, bv, wp, bp,
                                       n_heads=n_heads)
    out_bf16 = jax.block_until_ready(out_bf16)
    assert out_bf16.shape == (B, T, h_dim)
    assert jnp.allclose(out_bf16, ref, atol=3e-2, rtol=3e-2)

    # Full-f32 compute path for a tighter numerical check.
    out_f32 = masked_causal_attention(x, wq, bq, wk, bk, wv, bv, wp, bp,
                                      n_heads=n_heads,
                                      compute_dtype=jnp.float32)
    out_f32 = jax.block_until_ready(out_f32)
    assert jnp.allclose(out_f32, ref, atol=5e-3, rtol=5e-3)

    print("KERNEL_OK")
</pallas_src>

<mosaic_0001>
module attributes {stable_mosaic.version = 11 : i64} {
  func.func @kernel(%arg0: i32, %arg1: memref<1x8x32xf32, #tpu.memory_space<vmem>>, %arg2: memref<32x96xbf16, #tpu.memory_space<vmem>>, %arg3: memref<1x96xf32, #tpu.memory_space<vmem>>, %arg4: memref<32x32xbf16, #tpu.memory_space<vmem>>, %arg5: memref<1x32xf32, #tpu.memory_space<vmem>>, %arg6: memref<1x8x32xf32, #tpu.memory_space<vmem>>, %arg7: memref<8x32xbf16, #tpu.memory_space<vmem>>) attributes {dimension_semantics = [#tpu.dimension_semantics<parallel>], iteration_bounds = array<i64: 2>, scalar_prefetch = 0 : i64, scratch_operands = 1 : i64, tpu.core_type = #tpu.core_type<tc>, window_params = [{transform_indices = @transform_0, window_bounds = array<i64: 1, 8, 32>}, {pipeline_mode = #tpu.pipeline_mode<synchronous>, transform_indices = @transform_1, window_bounds = array<i64: 32, 96>}, {pipeline_mode = #tpu.pipeline_mode<synchronous>, transform_indices = @transform_2, window_bounds = array<i64: 1, 96>}, {pipeline_mode = #tpu.pipeline_mode<synchronous>, transform_indices = @transform_3, window_bounds = array<i64: 32, 32>}, {pipeline_mode = #tpu.pipeline_mode<synchronous>, transform_indices = @transform_4, window_bounds = array<i64: 1, 32>}, {transform_indices = @transform_5, window_bounds = array<i64: 1, 8, 32>}]} {
    %c0 = arith.constant 0 : index
    %c0_0 = arith.constant 0 : index
    %c0_1 = arith.constant 0 : index
    %0 = vector.load %arg1[%c0, %c0_0, %c0_1] : memref<1x8x32xf32, #tpu.memory_space<vmem>>, vector<1x8x32xf32>
    %1 = vector.shape_cast %0 : vector<1x8x32xf32> to vector<8x32xf32>
    %2 = arith.truncf %1 : vector<8x32xf32> to vector<8x32xbf16>
    %c0_2 = arith.constant 0 : index
    %c0_3 = arith.constant 0 : index
    %3 = vector.load %arg2[%c0_2, %c0_3] : memref<32x96xbf16, #tpu.memory_space<vmem>>, vector<32x96xbf16>
    %cst = arith.constant dense<0.000000e+00> : vector<8x96xf32>
    %4 = tpu.matmul %2, %3, %cst {dimension_numbers = #tpu.dot_dimension_numbers<[1], [0], [0], [1], [0, 0, 1, 1], [], []>} : vector<8x32xbf16>, vector<32x96xbf16>, vector<8x96xf32> -> vector<8x96xf32>
    %c0_4 = arith.constant 0 : index
    %c0_5 = arith.constant 0 : index
    %5 = vector.load %arg3[%c0_4, %c0_5] : memref<1x96xf32, #tpu.memory_space<vmem>>, vector<1x96xf32>
    %6 = vector.broadcast %5 : vector<1x96xf32> to vector<8x96xf32>
    %7 = arith.addf %4, %6 : vector<8x96xf32>
    %8 = vector.extract_strided_slice %7 {offsets = [0, 0], sizes = [8, 32], strides = [1, 1]} : vector<8x96xf32> to vector<8x32xf32>
    %9 = vector.extract_strided_slice %7 {offsets = [0, 32], sizes = [8, 32], strides = [1, 1]} : vector<8x96xf32> to vector<8x32xf32>
    %10 = vector.extract_strided_slice %7 {offsets = [0, 64], sizes = [8, 32], strides = [1, 1]} : vector<8x96xf32> to vector<8x32xf32>
    %11 = arith.truncf %10 : vector<8x32xf32> to vector<8x32xbf16>
    %12 = tpu.iota {dimensions = array<i32: 0>} : vector<8x8xi32>
    %13 = tpu.iota {dimensions = array<i32: 1>} : vector<8x8xi32>
    %14 = arith.cmpi sge, %12, %13 : vector<8x8xi32>
    %cst_6 = arith.constant 0.000000e+00 : f32
    %cst_7 = arith.constant -1.000000e+30 : f32
    %15 = vector.broadcast %cst_6 : f32 to vector<8x8xf32>
    %16 = vector.broadcast %cst_7 : f32 to vector<8x8xf32>
    %17 = arith.select %14, %15, %16 : vector<8x8xi1>, vector<8x8xf32>
    %18 = vector.extract_strided_slice %8 {offsets = [0, 0], sizes = [8, 16], strides = [1, 1]} : vector<8x32xf32> to vector<8x16xf32>
    %19 = arith.truncf %18 : vector<8x16xf32> to vector<8x16xbf16>
    %20 = vector.extract_strided_slice %9 {offsets = [0, 0], sizes = [8, 16], strides = [1, 1]} : vector<8x32xf32> to vector<8x16xf32>
    %21 = arith.truncf %20 : vector<8x16xf32> to vector<8x16xbf16>
    %22 = vector.extract_strided_slice %11 {offsets = [0, 0], sizes = [8, 16], strides = [1, 1]} : vector<8x32xbf16> to vector<8x16xbf16>
    "tpu.trace_start"() <{level = 10 : i32, message = "td,sd->ts"}> : () -> ()
    %cst_8 = arith.constant dense<0.000000e+00> : vector<8x8xf32>
    %23 = tpu.matmul %19, %21, %cst_8 {dimension_numbers = #tpu.dot_dimension_numbers<[1], [1], [0], [0], [0, 0, 1, 0], [], []>} : vector<8x16xbf16>, vector<8x16xbf16>, vector<8x8xf32> -> vector<8x8xf32>
    "tpu.trace_stop"() : () -> ()
    %24 = arith.addf %23, %17 : vector<8x8xf32>
    %cst_9 = arith.constant dense<0xFF800000> : vector<8xf32>
    %25 = vector.multi_reduction <maximumf>, %24, %cst_9 [1] : vector<8x8xf32> to vector<8xf32>
    %26 = vector.shape_cast %25 : vector<8xf32> to vector<8x1xf32>
    %27 = vector.broadcast %26 : vector<8x1xf32> to vector<8x8xf32>
    %28 = arith.subf %24, %27 : vector<8x8xf32>
    %29 = math.exp %28 : vector<8x8xf32>
    %cst_10 = arith.constant dense<0.000000e+00> : vector<8xf32>
    %30 = vector.multi_reduction <add>, %29, %cst_10 [1] : vector<8x8xf32> to vector<8xf32>
    %31 = vector.shape_cast %30 : vector<8xf32> to vector<8x1xf32>
    %32 = tpu.reciprocal %31 {approx = true} : vector<8x1xf32> -> vector<8x1xf32>
    %33 = vector.broadcast %32 : vector<8x1xf32> to vector<8x8xf32>
    %34 = arith.mulf %29, %33 : vector<8x8xf32>
    %35 = arith.truncf %34 : vector<8x8xf32> to vector<8x8xbf16>
    %cst_11 = arith.constant dense<0.000000e+00> : vector<8x16xf32>
    %36 = tpu.matmul %35, %22, %cst_11 {dimension_numbers = #tpu.dot_dimension_numbers<[1], [0], [0], [1], [0, 0, 1, 1], [], []>} : vector<8x8xbf16>, vector<8x16xbf16>, vector<8x16xf32> -> vector<8x16xf32>
    %37 = arith.truncf %36 : vector<8x16xf32> to vector<8x16xbf16>
    %c0_12 = arith.constant 0 : index
    %c0_13 = arith.constant 0 : index
    %38 = vector.load %arg7[%c0_12, %c0_13] : memref<8x32xbf16, #tpu.memory_space<vmem>>, vector<8x16xbf16>
    tpu.vector_store %arg7[%c0_12, %c0_13], %37 {strides = array<i32>} : memref<8x32xbf16, #tpu.memory_space<vmem>>, vector<8x16xbf16>,
    %39 = vector.extract_strided_slice %8 {offsets = [0, 16], sizes = [8, 16], strides = [1, 1]} : vector<8x32xf32> to vector<8x16xf32>
    %40 = arith.truncf %39 : vector<8x16xf32> to vector<8x16xbf16>
    %41 = vector.extract_strided_slice %9 {offsets = [0, 16], sizes = [8, 16], strides = [1, 1]} : vector<8x32xf32> to vector<8x16xf32>
    %42 = arith.truncf %41 : vector<8x16xf32> to vector<8x16xbf16>
    %43 = vector.extract_strided_slice %11 {offsets = [0, 16], sizes = [8, 16], strides = [1, 1]} : vector<8x32xbf16> to vector<8x16xbf16>
    "tpu.trace_start"() <{level = 10 : i32, message = "td,sd->ts"}> : () -> ()
    %cst_14 = arith.constant dense<0.000000e+00> : vector<8x8xf32>
    %44 = tpu.matmul %40, %42, %cst_14 {dimension_numbers = #tpu.dot_dimension_numbers<[1], [1], [0], [0], [0, 0, 1, 0], [], []>} : vector<8x16xbf16>, vector<8x16xbf16>, vector<8x8xf32> -> vector<8x8xf32>
    "tpu.trace_stop"() : () -> ()
    %45 = arith.addf %44, %17 : vector<8x8xf32>
    %cst_15 = arith.constant dense<0xFF800000> : vector<8xf32>
    %46 = vector.multi_reduction <maximumf>, %45, %cst_15 [1] : vector<8x8xf32> to vector<8xf32>
    %47 = vector.shape_cast %46 : vector<8xf32> to vector<8x1xf32>
    %48 = vector.broadcast %47 : vector<8x1xf32> to vector<8x8xf32>
    %49 = arith.subf %45, %48 : vector<8x8xf32>
    %50 = math.exp %49 : vector<8x8xf32>
    %cst_16 = arith.constant dense<0.000000e+00> : vector<8xf32>
    %51 = vector.multi_reduction <add>, %50, %cst_16 [1] : vector<8x8xf32> to vector<8xf32>
    %52 = vector.shape_cast %51 : vector<8xf32> to vector<8x1xf32>
    %53 = tpu.reciprocal %52 {approx = true} : vector<8x1xf32> -> vector<8x1xf32>
    %54 = vector.broadcast %53 : vector<8x1xf32> to vector<8x8xf32>
    %55 = arith.mulf %50, %54 : vector<8x8xf32>
    %56 = arith.truncf %55 : vector<8x8xf32> to vector<8x8xbf16>
    %cst_17 = arith.constant dense<0.000000e+00> : vector<8x16xf32>
    %57 = tpu.matmul %56, %43, %cst_17 {dimension_numbers = #tpu.dot_dimension_numbers<[1], [0], [0], [1], [0, 0, 1, 1], [], []>} : vector<8x8xbf16>, vector<8x16xbf16>, vector<8x16xf32> -> vector<8x16xf32>
    %58 = arith.truncf %57 : vector<8x16xf32> to vector<8x16xbf16>
    %c0_18 = arith.constant 0 : index
    %c16 = arith.constant 16 : index
    %59 = vector.load %arg7[%c0_18, %c16] : memref<8x32xbf16, #tpu.memory_space<vmem>>, vector<8x16xbf16>
    tpu.vector_store %arg7[%c0_18, %c16], %58 {strides = array<i32>} : memref<8x32xbf16, #tpu.memory_space<vmem>>, vector<8x16xbf16>,
    %c0_19 = arith.constant 0 : index
    %c0_20 = arith.constant 0 : index
    %60 = vector.load %arg7[%c0_19, %c0_20] : memref<8x32xbf16, #tpu.memory_space<vmem>>, vector<8x32xbf16>
    %c0_21 = arith.constant 0 : index
    %c0_22 = arith.constant 0 : index
    %61 = vector.load %arg4[%c0_21, %c0_22] : memref<32x32xbf16, #tpu.memory_space<vmem>>, vector<32x32xbf16>
    %cst_23 = arith.constant dense<0.000000e+00> : vector<8x32xf32>
    %62 = tpu.matmul %60, %61, %cst_23 {dimension_numbers = #tpu.dot_dimension_numbers<[1], [0], [0], [1], [0, 0, 1, 1], [], []>} : vector<8x32xbf16>, vector<32x32xbf16>, vector<8x32xf32> -> vector<8x32xf32>
    %c0_24 = arith.constant 0 : index
    %c0_25 = arith.constant 0 : index
    %63 = vector.load %arg5[%c0_24, %c0_25] : memref<1x32xf32, #tpu.memory_space<vmem>>, vector<1x32xf32>
    %64 = vector.broadcast %63 : vector<1x32xf32> to vector<8x32xf32>
    %65 = arith.addf %62, %64 : vector<8x32xf32>
    %66 = vector.shape_cast %65 : vector<8x32xf32> to vector<1x8x32xf32>
    %c0_26 = arith.constant 0 : index
    %c0_27 = arith.constant 0 : index
    %c0_28 = arith.constant 0 : index
    %67 = vector.load %arg6[%c0_26, %c0_27, %c0_28] : memref<1x8x32xf32, #tpu.memory_space<vmem>>, vector<1x8x32xf32>
    tpu.vector_store %arg6[%c0_26, %c0_27, %c0_28], %66 {strides = array<i32>} : memref<1x8x32xf32, #tpu.memory_space<vmem>>, vector<1x8x32xf32>,
    return
  }
  func.func @transform_0(%arg0: i32) -> (i32, i32, i32) {
    %c0_i32 = arith.constant 0 : i32
    %c0_i32_0 = arith.constant 0 : i32
    %c0_i32_1 = arith.constant 0 : i32
    return %arg0, %c0_i32, %c0_i32_0 : i32, i32, i32
  }
  func.func @transform_1(%arg0: i32) -> (i32, i32) {
    %c0_i32 = arith.constant 0 : i32
    %c0_i32_0 = arith.constant 0 : i32
    %c0_i32_1 = arith.constant 0 : i32
    return %c0_i32, %c0_i32_0 : i32, i32
  }
  func.func @transform_2(%arg0: i32) -> (i32, i32) {
    %c0_i32 = arith.constant 0 : i32
    %c0_i32_0 = arith.constant 0 : i32
    %c0_i32_1 = arith.constant 0 : i32
    return %c0_i32, %c0_i32_0 : i32, i32
  }
  func.func @transform_3(%arg0: i32) -> (i32, i32) {
    %c0_i32 = arith.constant 0 : i32
    %c0_i32_0 = arith.constant 0 : i32
    %c0_i32_1 = arith.constant 0 : i32
    return %c0_i32, %c0_i32_0 : i32, i32
  }
  func.func @transform_4(%arg0: i32) -> (i32, i32) {
    %c0_i32 = arith.constant 0 : i32
    %c0_i32_0 = arith.constant 0 : i32
    %c0_i32_1 = arith.constant 0 : i32
    return %c0_i32, %c0_i32_0 : i32, i32
  }
  func.func @transform_5(%arg0: i32) -> (i32, i32, i32) {
    %c0_i32 = arith.constant 0 : i32
    %c0_i32_0 = arith.constant 0 : i32
    %c0_i32_1 = arith.constant 0 : i32
    return %arg0, %c0_i32, %c0_i32_0 : i32, i32, i32
  }
}

</mosaic_0001>

<llo_original>
// kernel: masked_causal_attention.1
$region0: #{masked_causal_attention.1}
  #allocation0 [shape = 'u32[]', space=smem, size = 0x4, offset = 0x4, fixed_abs, tag = 'smem constant byte address 0x4 - core index']
  #allocation1 [shape = 'u32[144,128]{1,0:T(1,128)}', space=vmem, size = 0x12000, scoped, tag = 'internal scratch']
  #allocation2 [shape = 'bf16[8,32]{1,0:T(8,128)(2,1)}', space=vmem, size = 0x800, scoped, tag = 'scratch operand']
  %s0 = inlined_call_operand.vmem [shape: f32[2,8,32], index: 0, kind: input, shape index: {}]
  %s1 = inlined_call_operand.vmem [shape: bf16[32,96], index: 1, kind: input, shape index: {}]
  %s2 = inlined_call_operand.vmem [shape: f32[1,96], index: 2, kind: input, shape index: {}]
  %s3 = inlined_call_operand.vmem [shape: bf16[32,32], index: 3, kind: input, shape index: {}]
  %s4 = inlined_call_operand.vmem [shape: f32[1,32], index: 4, kind: input, shape index: {}]
  %s5 = inlined_call_operand.hbm [shape: f32[2,8,32], index: 5, kind: output, shape index: {}]
  %s6 = sld [smem:[#allocation0]]
  $region53: #{masked_causal_attention.1} parent=0
    _
  %s8 = ssub.s32 1, %s6
  %s9 = scalar_select 0, %s8, %s6
  $region1: #{masked_causal_attention.1} parent=0
    #allocation3 [shape = 'u8[8192]{0}', space=vmem, size = 0x2000, scoped, tag = 'output window, operand 0']
    #allocation4 [shape = 's32[2]{0}', space=sflag, size = 0x8, scoped, tag = 'scoped memory for masked_causal_attention.1']
    %10 = vsyncpa [#allocation4], 0
    %s11 = scalar_lea.sflag [#allocation4], 1
    %12 = vsyncpa %s11, 0
    loop: start=0, step=1, limit=4
    $region2: #{masked_causal_attention.1} parent=1 // loop_pre_header
      _
    $region3: #{masked_causal_attention.1} parent=1 // loop_header
      %s14 = sphi 0, %s18
      %p15 = scmp.ge.s32.totalorder %s14, 4
      %s24 = sphi 0, %s26
      %s27 = sphi 0, %s24
      %s28 = sphi 0, %s27
      %s44 = sphi 0, %s28
      %s48 = sphi 0, %s48
      %s50 = sphi 0, %s48
      %s51 = sphi 0, %s50
      %s65 = sphi 0, %s51
      %s69 = sphi 0, %s69
      %s71 = sphi 0, %s69
      %s72 = sphi 0, %s71
      %s86 = sphi 0, %s72
      %s90 = sphi 0, %s90
      %s92 = sphi 0, %s90
      %s93 = sphi 0, %s92
      %s107 = sphi 0, %s93
      %s111 = sphi 0, %s111
      %s113 = sphi 0, %s111
      %s114 = sphi 0, %s113
      %s128 = sphi 0, %s114
      %s134 = sphi 0, %s136
      %s137 = sphi 0, %s134
      %s138 = sphi 0, %s137
      %s154 = sphi 0, %s138
    $region4: #{masked_causal_attention.1} parent=1 // loop_header_branch
      %17 = sbr.rel (%p15) target = $region8
    $region5: #{masked_causal_attention.1} parent=1 // loop_body
      %s19 = ssub.s32 %s14, 1
      %s20 = ssub.s32 %s14, 2
      %s21 = sadd.s32 %s14, 1
      %s22 = ssub.s32 %s14, %s21
      %p23 = scmp.eq.s32.totalorder %s22, 0
      %s25 = sadd.s32 %s24, 1
      %s26 = scalar_select %p23, %s24, %s25
      %p29 = pneg %p23
      %p30 = scmp.eq.s32.totalorder %s14, 1
      %p31 = por %p29, %p30
      %p32 = scmp.ne.s32.totalorder %s24, %s27
      %p33 = scmp.eq.s32.totalorder %s14, 0
      %p34 = por %p32, %p33
      %p35 = scmp.ne.s32.totalorder %s24, %s27
      %p36 = scmp.eq.s32.totalorder %s19, 1
      %p37 = por %p35, %p36
      %p38 = scmp.ne.s32.totalorder %s27, %s28
      %p39 = scmp.eq.s32.totalorder %s19, 0
      %p40 = por %p38, %p39
      %p41 = scmp.ne.s32.totalorder %s27, %s28
      %p42 = scmp.eq.s32.totalorder %s20, 1
      %p43 = por %p41, %p42
      %p45 = scmp.ne.s32.totalorder %s28, %s44
      %p46 = scmp.eq.s32.totalorder %s20, 0
      %p47 = por %p45, %p46
      %s49 = sadd.s32 %s48, 1
      %p52 = scmp.eq.s32.totalorder %s14, 1
      %p53 = scmp.ne.s32.totalorder %s48, %s50
      %p54 = scmp.eq.s32.totalorder %s14, 0
      %p55 = por %p53, %p54
      %p56 = scmp.ne.s32.totalorder %s48, %s50
      %p57 = scmp.eq.s32.totalorder %s19, 1
      %p58 = por %p56, %p57
      %p59 = scmp.ne.s32.totalorder %s50, %s51
      %p60 = scmp.eq.s32.totalorder %s19, 0
      %p61 = por %p59, %p60
      %p62 = scmp.ne.s32.totalorder %s50, %s51
      %p63 = scmp.eq.s32.totalorder %s20, 1
      %p64 = por %p62, %p63
      %p66 = scmp.ne.s32.totalorder %s51, %s65
      %p67 = scmp.eq.s32.totalorder %s20, 0
      %p68 = por %p66, %p67
      %s70 = sadd.s32 %s69, 1
      %p73 = scmp.eq.s32.totalorder %s14, 1
      %p74 = scmp.ne.s32.totalorder %s69, %s71
      %p75 = scmp.eq.s32.totalorder %s14, 0
      %p76 = por %p74, %p75
      %p77 = scmp.ne.s32.totalorder %s69, %s71
      %p78 = scmp.eq.s32.totalorder %s19, 1
      %p79 = por %p77, %p78
      %p80 = scmp.ne.s32.totalorder %s71, %s72
      %p81 = scmp.eq.s32.totalorder %s19, 0
      %p82 = por %p80, %p81
      %p83 = scmp.ne.s32.totalorder %s71, %s72
      %p84 = scmp.eq.s32.totalorder %s20, 1
      %p85 = por %p83, %p84
      %p87 = scmp.ne.s32.totalorder %s72, %s86
      %p88 = scmp.eq.s32.totalorder %s20, 0
      %p89 = por %p87, %p88
      %s91 = sadd.s32 %s90, 1
      %p94 = scmp.eq.s32.totalorder %s14, 1
      %p95 = scmp.ne.s32.totalorder %s90, %s92
      %p96 = scmp.eq.s32.totalorder %s14, 0
      %p97 = por %p95, %p96
      %p98 = scmp.ne.s32.totalorder %s90, %s92
      %p99 = scmp.eq.s32.totalorder %s19, 1
      %p100 = por %p98, %p99
      %p101 = scmp.ne.s32.totalorder %s92, %s93
      %p102 = scmp.eq.s32.totalorder %s19, 0
      %p103 = por %p101, %p102
      %p104 = scmp.ne.s32.totalorder %s92, %s93
      %p105 = scmp.eq.s32.totalorder %s20, 1
      %p106 = por %p104, %p105
      %p108 = scmp.ne.s32.totalorder %s93, %s107
      %p109 = scmp.eq.s32.totalorder %s20, 0
      %p110 = por %p108, %p109
      %s112 = sadd.s32 %s111, 1
      %p115 = scmp.eq.s32.totalorder %s14, 1
      %p116 = scmp.ne.s32.totalorder %s111, %s113
      %p117 = scmp.eq.s32.totalorder %s14, 0
      %p118 = por %p116, %p117
      %p119 = scmp.ne.s32.totalorder %s111, %s113
      %p120 = scmp.eq.s32.totalorder %s19, 1
      %p121 = por %p119, %p120
      %p122 = scmp.ne.s32.totalorder %s113, %s114
      %p123 = scmp.eq.s32.totalorder %s19, 0
      %p124 = por %p122, %p123
      %p125 = scmp.ne.s32.totalorder %s113, %s114
      %p126 = scmp.eq.s32.totalorder %s20, 1
      %p127 = por %p125, %p126
      %p129 = scmp.ne.s32.totalorder %s114, %s128
      %p130 = scmp.eq.s32.totalorder %s20, 0
      %p131 = por %p129, %p130
      %s132 = ssub.s32 %s14, %s21
      %p133 = scmp.eq.s32.totalorder %s132, 0
      %s135 = sadd.s32 %s134, 1
      %s136 = scalar_select %p133, %s134, %s135
      %p139 = pneg %p133
      %p140 = scmp.eq.s32.totalorder %s14, 1
      %p141 = por %p139, %p140
      %p142 = scmp.ne.s32.totalorder %s134, %s137
      %p143 = scmp.eq.s32.totalorder %s14, 0
      %p144 = por %p142, %p143
      %p145 = scmp.ne.s32.totalorder %s134, %s137
      %p146 = scmp.eq.s32.totalorder %s19, 1
      %p147 = por %p145, %p146
      %p148 = scmp.ne.s32.totalorder %s137, %s138
      %p149 = scmp.eq.s32.totalorder %s19, 0
      %p150 = por %p148, %p149
      %p151 = scmp.ne.s32.totalorder %s137, %s138
      %p152 = scmp.eq.s32.totalorder %s20, 1
      %p153 = por %p151, %p152
      %p155 = scmp.ne.s32.totalorder %s138, %s154
      %p156 = scmp.eq.s32.totalorder %s20, 0
      %p157 = por %p155, %p156
      %p158 = scmp.le.s32.totalorder 1, %s14
      %p159 = scmp.lt.s32.totalorder %s14, 3
      %p160 = pnand %p158, %p159
      %p161 = pneg %p160
      // Predicated region
      $region9: #{masked_causal_attention.1} parent=5 // pred_check
        _
      $region10: #{masked_causal_attention.1} parent=5 // pred_check_branch
        %163 = sbr.rel (%p160) target = $region12
      $region11: #{masked_causal_attention.1} parent=5 // pred_region
        %s164 = ssub.s32 %s14, 1
        // Predicated region
        $region13: #{masked_causal_attention.1} parent=11 // pred_check
          %p165 = pneg %p61
        $region14: #{masked_causal_attention.1} parent=11 // pred_check_branch
          %167 = sbr.rel (%p165) target = $region16
        $region15: #{masked_causal_attention.1} parent=11 // pred_region
          _
        $region16: #{masked_causal_attention.1} parent=11 // pred_fallthru
          _
        // Predicated region
        $region17: #{masked_causal_attention.1} parent=11 // pred_check
          %p168 = pneg %p82
        $region18: #{masked_causal_attention.1} parent=11 // pred_check_branch
          %170 = sbr.rel (%p168) target = $region20
        $region19: #{masked_causal_attention.1} parent=11 // pred_region
          _
        $region20: #{masked_causal_attention.1} parent=11 // pred_fallthru
          _
        // Predicated region
        $region21: #{masked_causal_attention.1} parent=11 // pred_check
          %p171 = pneg %p103
        $region22: #{masked_causal_attention.1} parent=11 // pred_check_branch
          %173 = sbr.rel (%p171) target = $region24
        $region23: #{masked_causal_attention.1} parent=11 // pred_region
          _
        $region24: #{masked_causal_attention.1} parent=11 // pred_fallthru
          _
        // Predicated region
        $region25: #{masked_causal_attention.1} parent=11 // pred_check
          %p174 = pneg %p124
        $region26: #{masked_causal_attention.1} parent=11 // pred_check_branch
          %176 = sbr.rel (%p174) target = $region28
        $region27: #{masked_causal_attention.1} parent=11 // pred_region
          _
        $region28: #{masked_causal_attention.1} parent=11 // pred_fallthru
          _
      $region12: #{masked_causal_attention.1} parent=5 // pred_fallthru
        _
      %p177 = scmp.lt.s32.totalorder %s14, 2
      // Predicated region
      $region29: #{masked_causal_attention.1} parent=5 // pred_check
        %p178 = pneg %p177
      $region30: #{masked_causal_attention.1} parent=5 // pred_check_branch
        %180 = sbr.rel (%p178) target = $region32
      $region31: #{masked_causal_attention.1} parent=5 // pred_region
        // Predicated region
        $region33: #{masked_causal_attention.1} parent=31 // pred_check
          %p181 = pneg %p34
        $region34: #{masked_causal_attention.1} parent=31 // pred_check_branch
          %183 = sbr.rel (%p181) target = $region36
        $region35: #{masked_causal_attention.1} parent=31 // pred_region
          %p184 = scmp.lt.s32.totalorder %s14, 1
          %s185 = scalar_select %p184, %s14, 1
          %s186 = smul.addr %s185, 8
          %s187 = scalar_lea.vmem %s0, %s186
        $region36: #{masked_causal_attention.1} parent=31 // pred_fallthru
          _
      $region32: #{masked_causal_attention.1} parent=5 // pred_fallthru
        _
      %p188 = scmp.le.s32.totalorder 1, %s14
      %p189 = scmp.lt.s32.totalorder %s14, 3
      %p190 = pnand %p188, %p189
      %p191 = pneg %p190
      // Predicated region
      $region37: #{masked_causal_attention.1} parent=5 // pred_check
        _
      $region38: #{masked_causal_attention.1} parent=5 // pred_check_branch
        %193 = sbr.rel (%p190) target = $region40
      $region39: #{masked_causal_attention.1} parent=5 // pred_region
        %s194 = ssub.s32 %s14, 1
        %p195 = scmp.lt.s32.totalorder %s19, 1
        %s196 = scalar_select %p195, %s19, 1
        %s197 = smul.addr %s196, 8
        %s198 = scalar_lea.vmem %s0, %s197
        %p199 = pneg %p40
        %p200 = pneg %p37
        %p201 = pneg %p61
        %p202 = pneg %p58
        %p203 = pneg %p82
        %p204 = pneg %p79
        %p205 = pneg %p103
        %p206 = pneg %p100
        %p207 = pneg %p124
        %p208 = pneg %p121
        %p209 = pneg %p150
        %p210 = pneg %p147
        %s211 = sand.u32 %s137, 1
        %s212 = scalar_lea.sflag [#allocation4], %s211
        %s213 = sand.u32 %s137, 1
        %s214 = smul.addr %s213, 8
        %s215 = scalar_lea.vmem [#allocation3], %s214
        %p216 = scmp.lt.s32.totalorder %s19, 1
        %s217 = scalar_select %p216, %s19, 1
        %s218 = smul.addr %s217, 8
        %s219 = scalar_lea.vmem %s0, %s218
        %v221 = vld [vmem:[%s219] sm:$0xff]
        %v222 = vpack.c.bf16 %v221, %v221
        %v223 = vld [vmem:[%s1] sm:$0xf]
        %v224 = vld [vmem:[%s1 + $0x4] sm:$0xf]
        %v225 = vld [vmem:[%s1 + $0x8] sm:$0xf]
        %v226 = vld [vmem:[%s1 + $0xc] sm:$0xf]
        %v227 = vld [vmem:[%s2] sm:$0x1]
        %v229 = vlaneseq
        %v230 = vshrl.u32 %v229, 7
        %v231 = vsub.s32 0, %v230
        %v232 = vrot.slane %v227, %v231
        %v238 = vunpack.c.l.b16 %v223
        %v239 = vunpack.c.l.b16 %v224
        %v240 = vunpack.c.l.b16 %v225
        %v241 = vunpack.c.l.b16 %v226
        %v242 = vpack.c.b16 %v239, %v238
        %v243 = vpack.c.b16 %v241, %v240
        %vm246 = vcmask 261120
        %v248 = vsel %vm246, %v222, 0
        %250 = vmatprep.subr.bf16.mxu0 0
        %251 = vmatpush1.bf16.msra.mxu0 %v242
        %252 = vmatprep.subr.bf16.mxu0 0
        %253 = vmatpush1.bf16.msra.mxu0 %v243
        %254 = vmatprep.subr.bf16.mxu0 0
        %255 = vmatpush1.bf16.msra.mxu0 0
        %256 = vmatprep.subr.bf16.mxu0 0
        %257 = vmatpush1.bf16.msra.mxu0 0
        %258 = vmatprep.subr.bf16.mxu0 0
        %259 = vmatpush1.bf16.msra.mxu0 0
        %260 = vmatprep.subr.bf16.mxu0 0
        %261 = vmatpush1.bf16.msra.mxu0 0
        %262 = vmatprep.subr.bf16.mxu0 0
        %263 = vmatpush1.bf16.msra.mxu0 0
        %264 = vmatprep.subr.bf16.mxu0 0
        %265 = vmatpush1.bf16.msra.mxu0 0
        %266 = vmatprep.subr.bf16.mxu0 0
        %267 = vmatpush1.bf16.msra.mxu0 0
        %268 = vmatprep.subr.bf16.mxu0 0
        %269 = vmatpush1.bf16.msra.mxu0 0
        %270 = vmatprep.subr.bf16.mxu0 0
        %271 = vmatpush1.bf16.msra.mxu0 0
        %272 = vmatprep.subr.bf16.mxu0 0
        %273 = vmatpush1.bf16.msra.mxu0 0
        %274 = vmatprep.subr.bf16.mxu0 0
        %275 = vmatpush1.bf16.msra.mxu0 0
        %276 = vmatprep.subr.bf16.mxu0 0
        %277 = vmatpush1.bf16.msra.mxu0 0
        %278 = vmatprep.subr.bf16.mxu0 0
        %279 = vmatpush1.bf16.msra.mxu0 0
        %280 = vmatprep.subr.bf16.mxu0 0
        %281 = vmatpush1.bf16.msra.mxu0 0
        %282 = vmatprep.mubr.bf16.mxu0 0
        %283 = vmatmul.mubr.bf16.gmra.mrb[0].mxu0 %v248
        %v284 = vpop.f32.mrb[0].mxu0
        %v285 = vadd.f32 %v232, %v284
        %v286 = vpop.f32.mrb[0].mxu0
        %v287 = vpop.f32.mrb[0].mxu0
        %v288 = vpop.f32.mrb[0].mxu0
        %289 = vdwg.mxu0
        %v290 = vpack.c.bf16 %v285, %v285
        %v291 = vlaneseq
        %v292 = vshrl.u32 %v291, 7
        %v293 = vlaneseq
        %v294 = vand.u32 %v293, 127
        %vm295 = vcmp.ge.s32.totalorder %v292, %v294
        %v296 = vsel %vm295, 0.0, -1e+30
        %298 = vrot.lane.b32.xlu0 %v290, 96
        %v299 = vpop.permute.xlu0 %298
        %vm300 = vcmask 130048
        %v302 = vsel %vm300, %v290, 0
        %v305 = vsel %vm300, %v299, 0
        %307 = vmatprep.subr.bf16.mxu0 0
        %308 = vmatpush1.bf16.xpose.msra.mxu0 %v305
        %309 = vmatprep.subr.bf16.mxu0 0
        %310 = vmatpush1.bf16.xpose.msra.mxu0 0
        %311 = vmatprep.subr.bf16.mxu0 0
        %312 = vmatpush1.bf16.xpose.msra.mxu0 0
        %313 = vmatprep.subr.bf16.mxu0 0
        %314 = vmatpush1.bf16.xpose.msra.mxu0 0
        %315 = vmatprep.subr.bf16.mxu0 0
        %316 = vmatpush1.bf16.xpose.msra.mxu0 0
        %317 = vmatprep.subr.bf16.mxu0 0
        %318 = vmatpush1.bf16.xpose.msra.mxu0 0
        %319 = vmatprep.subr.bf16.mxu0 0
        %320 = vmatpush1.bf16.xpose.msra.mxu0 0
        %321 = vmatprep.subr.bf16.mxu0 0
        %322 = vmatpush1.bf16.xpose.msra.mxu0 0
        %323 = vmatprep.subr.bf16.mxu0 0
        %324 = vmatpush1.bf16.xpose.msra.mxu0 0
        %325 = vmatprep.subr.bf16.mxu0 0
        %326 = vmatpush1.bf16.xpose.msra.mxu0 0
        %327 = vmatprep.subr.bf16.mxu0 0
        %328 = vmatpush1.bf16.xpose.msra.mxu0 0
        %329 = vmatprep.subr.bf16.mxu0 0
        %330 = vmatpush1.bf16.xpose.msra.mxu0 0
        %331 = vmatprep.subr.bf16.mxu0 0
        %332 = vmatpush1.bf16.xpose.msra.mxu0 0
        %333 = vmatprep.subr.bf16.mxu0 0
        %334 = vmatpush1.bf16.xpose.msra.mxu0 0
        %335 = vmatprep.subr.bf16.mxu0 0
        %336 = vmatpush1.bf16.xpose.msra.mxu0 0
        %337 = vmatprep.subr.bf16.mxu0 0
        %338 = vmatpush1.bf16.xpose.msra.mxu0 0
        %339 = vmatprep.mubr.bf16.mxu0 0
        %340 = vmatmul.mubr.bf16.gmra.mrb[0].mxu0 %v302
        %v341 = vpop.f32.mrb[0].mxu0
        %v342 = vadd.f32 %v296, %v341
        %v343 = vpop.f32.mrb[0].mxu0
        %v344 = vpop.f32.mrb[0].mxu0
        %v345 = vpop.f32.mrb[0].mxu0
        %346 = vdwg.mxu0
        %vm347 = vcmask 64512
        %v348 = vsel %vm347, %v342, -inf
        %349 = vmax.xlane.f32.xlu0 %v348
        %v350 = vpop.xlane.xlu0 %349
        %v351 = vsub.f32 %v342, %v350
        %v352 = vmul.f32 %v351, 1.442695
        %v353 = vpow.pop %v352
        %v354 = vsel %vm347, %v353, 0.0
        %355 = vadd.xlane.f32.xlu0 %v354
        %v356 = vpop.xlane.xlu0 %355
        %v357 = vrcp.pop %v356
        %v358 = vmul.f32 %v353, %v357
        %v359 = vpack.c.bf16 %v358, %v358
        %360 = vrot.lane.b32.xlu0 %v290, 64
        %v361 = vpop.permute.xlu0 %360
        %v363 = vsel %vm347, %v359, 0
        %vm365 = vcmask 1043456
        %v367 = vsel %vm365, %v361, 0
        %369 = vmatprep.subr.bf16.mxu0 0
        %370 = vmatpush1.bf16.msra.mxu0 %v367
        %371 = vmatprep.subr.bf16.mxu0 0
        %372 = vmatpush1.bf16.msra.mxu0 0
        %373 = vmatprep.subr.bf16.mxu0 0
        %374 = vmatpush1.bf16.msra.mxu0 0
        %375 = vmatprep.subr.bf16.mxu0 0
        %376 = vmatpush1.bf16.msra.mxu0 0
        %377 = vmatprep.subr.bf16.mxu0 0
        %378 = vmatpush1.bf16.msra.mxu0 0
        %379 = vmatprep.subr.bf16.mxu0 0
        %380 = vmatpush1.bf16.msra.mxu0 0
        %381 = vmatprep.subr.bf16.mxu0 0
        %382 = vmatpush1.bf16.msra.mxu0 0
        %383 = vmatprep.subr.bf16.mxu0 0
        %384 = vmatpush1.bf16.msra.mxu0 0
        %385 = vmatprep.subr.bf16.mxu0 0
        %386 = vmatpush1.bf16.msra.mxu0 0
        %387 = vmatprep.subr.bf16.mxu0 0
        %388 = vmatpush1.bf16.msra.mxu0 0
        %389 = vmatprep.subr.bf16.mxu0 0
        %390 = vmatpush1.bf16.msra.mxu0 0
        %391 = vmatprep.subr.bf16.mxu0 0
        %392 = vmatpush1.bf16.msra.mxu0 0
        %393 = vmatprep.subr.bf16.mxu0 0
        %394 = vmatpush1.bf16.msra.mxu0 0
        %395 = vmatprep.subr.bf16.mxu0 0
        %396 = vmatpush1.bf16.msra.mxu0 0
        %397 = vmatprep.subr.bf16.mxu0 0
        %398 = vmatpush1.bf16.msra.mxu0 0
        %399 = vmatprep.subr.bf16.mxu0 0
        %400 = vmatpush1.bf16.msra.mxu0 0
        %401 = vmatprep.mubr.bf16.mxu0 0
        %402 = vmatmul.mubr.bf16.gmra.mrb[0].mxu0 %v363
        %v403 = vpop.f32.mrb[0].mxu0
        %v404 = vadd.f32 0.0, %v403
        %v405 = vpop.f32.mrb[0].mxu0
        %v406 = vpop.f32.mrb[0].mxu0
        %v407 = vpop.f32.mrb[0].mxu0
        %408 = vdwg.mxu0
        %v409 = vpack.c.bf16 %v404, %v404
        %vm410 = vcmask 125952
        %411 = vst.msk [vmem:[#allocation2] sm:$0xf] %vm410, %v409
        %412 = vrot.lane.b32.xlu0 %v290, 112
        %v413 = vpop.permute.xlu0 %412
        %414 = vrot.lane.b32.xlu0 %v290, 80
        %v415 = vpop.permute.xlu0 %414
        %v417 = vsel %vm300, %v413, 0
        %v420 = vsel %vm300, %v415, 0
        %422 = vmatprep.subr.bf16.mxu0 0
        %423 = vmatpush1.bf16.xpose.msra.mxu0 %v420
        %424 = vmatprep.subr.bf16.mxu0 0
        %425 = vmatpush1.bf16.xpose.msra.mxu0 0
        %426 = vmatprep.subr.bf16.mxu0 0
        %427 = vmatpush1.bf16.xpose.msra.mxu0 0
        %428 = vmatprep.subr.bf16.mxu0 0
        %429 = vmatpush1.bf16.xpose.msra.mxu0 0
        %430 = vmatprep.subr.bf16.mxu0 0
        %431 = vmatpush1.bf16.xpose.msra.mxu0 0
        %432 = vmatprep.subr.bf16.mxu0 0
        %433 = vmatpush1.bf16.xpose.msra.mxu0 0
        %434 = vmatprep.subr.bf16.mxu0 0
        %435 = vmatpush1.bf16.xpose.msra.mxu0 0
        %436 = vmatprep.subr.bf16.mxu0 0
        %437 = vmatpush1.bf16.xpose.msra.mxu0 0
        %438 = vmatprep.subr.bf16.mxu0 0
        %439 = vmatpush1.bf16.xpose.msra.mxu0 0
        %440 = vmatprep.subr.bf16.mxu0 0
        %441 = vmatpush1.bf16.xpose.msra.mxu0 0
        %442 = vmatprep.subr.bf16.mxu0 0
        %443 = vmatpush1.bf16.xpose.msra.mxu0 0
        %444 = vmatprep.subr.bf16.mxu0 0
        %445 = vmatpush1.bf16.xpose.msra.mxu0 0
        %446 = vmatprep.subr.bf16.mxu0 0
        %447 = vmatpush1.bf16.xpose.msra.mxu0 0
        %448 = vmatprep.subr.bf16.mxu0 0
        %449 = vmatpush1.bf16.xpose.msra.mxu0 0
        %450 = vmatprep.subr.bf16.mxu0 0
        %451 = vmatpush1.bf16.xpose.msra.mxu0 0
        %452 = vmatprep.subr.bf16.mxu0 0
        %453 = vmatpush1.bf16.xpose.msra.mxu0 0
        %454 = vmatprep.mubr.bf16.mxu0 0
        %455 = vmatmul.mubr.bf16.gmra.mrb[0].mxu0 %v417
        %v456 = vpop.f32.mrb[0].mxu0
        %v457 = vadd.f32 %v296, %v456
        %v458 = vpop.f32.mrb[0].mxu0
        %v459 = vpop.f32.mrb[0].mxu0
        %v460 = vpop.f32.mrb[0].mxu0
        %461 = vdwg.mxu0
        %v462 = vsel %vm347, %v457, -inf
        %463 = vmax.xlane.f32.xlu0 %v462
        %v464 = vpop.xlane.xlu0 %463
        %v465 = vsub.f32 %v457, %v464
        %v466 = vmul.f32 %v465, 1.442695
        %v467 = vpow.pop %v466
        %v468 = vsel %vm347, %v467, 0.0
        %469 = vadd.xlane.f32.xlu0 %v468
        %v470 = vpop.xlane.xlu0 %469
        %v471 = vrcp.pop %v470
        %v472 = vmul.f32 %v467, %v471
        %v473 = vpack.c.bf16 %v472, %v472
        %474 = vrot.lane.b32.xlu0 %v290, 48
        %v475 = vpop.permute.xlu0 %474
        %v477 = vsel %vm347, %v473, 0
        %v480 = vsel %vm365, %v475, 0
        %482 = vmatprep.subr.bf16.mxu0 0
        %483 = vmatpush1.bf16.msra.mxu0 %v480
        %484 = vmatprep.subr.bf16.mxu0 0
        %485 = vmatpush1.bf16.msra.mxu0 0
        %486 = vmatprep.subr.bf16.mxu0 0
        %487 = vmatpush1.bf16.msra.mxu0 0
        %488 = vmatprep.subr.bf16.mxu0 0
        %489 = vmatpush1.bf16.msra.mxu0 0
        %490 = vmatprep.subr.bf16.mxu0 0
        %491 = vmatpush1.bf16.msra.mxu0 0
        %492 = vmatprep.subr.bf16.mxu0 0
        %493 = vmatpush1.bf16.msra.mxu0 0
        %494 = vmatprep.subr.bf16.mxu0 0
        %495 = vmatpush1.bf16.msra.mxu0 0
        %496 = vmatprep.subr.bf16.mxu0 0
        %497 = vmatpush1.bf16.msra.mxu0 0
        %498 = vmatprep.subr.bf16.mxu0 0
        %499 = vmatpush1.bf16.msra.mxu0 0
        %500 = vmatprep.subr.bf16.mxu0 0
        %501 = vmatpush1.bf16.msra.mxu0 0
        %502 = vmatprep.subr.bf16.mxu0 0
        %503 = vmatpush1.bf16.msra.mxu0 0
        %504 = vmatprep.subr.bf16.mxu0 0
        %505 = vmatpush1.bf16.msra.mxu0 0
        %506 = vmatprep.subr.bf16.mxu0 0
        %507 = vmatpush1.bf16.msra.mxu0 0
        %508 = vmatprep.subr.bf16.mxu0 0
        %509 = vmatpush1.bf16.msra.mxu0 0
        %510 = vmatprep.subr.bf16.mxu0 0
        %511 = vmatpush1.bf16.msra.mxu0 0
        %512 = vmatprep.subr.bf16.mxu0 0
        %513 = vmatpush1.bf16.msra.mxu0 0
        %514 = vmatprep.mubr.bf16.mxu0 0
        %515 = vmatmul.mubr.bf16.gmra.mrb[0].mxu0 %v477
        %v516 = vpop.f32.mrb[0].mxu0
        %v517 = vadd.f32 0.0, %v516
        %v518 = vpop.f32.mrb[0].mxu0
        %v519 = vpop.f32.mrb[0].mxu0
        %v520 = vpop.f32.mrb[0].mxu0
        %521 = vdwg.mxu0
        %v522 = vpack.c.bf16 %v517, %v517
        %v524 = vunpack.c.l.b16 %v522
        %v525 = vpack.c.b16 %v524, %v524
        %526 = vrot.lane.b32.xlu0 %v525, 16
        %v527 = vpop.permute.xlu0 %526
        %vm529 = vcmask 257152
        %530 = vst.msk [vmem:[#allocation2] sm:$0xf] %vm529, %v527
        %v531 = vld [vmem:[#allocation2] sm:$0xf]
        %v532 = vld [vmem:[%s3] sm:$0xf]
        %v533 = vld [vmem:[%s3 + $0x4] sm:$0xf]
        %v534 = vld [vmem:[%s3 + $0x8] sm:$0xf]
        %v535 = vld [vmem:[%s3 + $0xc] sm:$0xf]
        %v536 = vld [vmem:[%s4] sm:$0x1]
        %v538 = vlaneseq
        %v539 = vshrl.u32 %v538, 7
        %v540 = vsub.s32 0, %v539
        %v541 = vrot.slane %v536, %v540
        %v547 = vunpack.c.l.b16 %v532
        %v548 = vunpack.c.l.b16 %v533
        %v549 = vunpack.c.l.b16 %v534
        %v550 = vunpack.c.l.b16 %v535
        %v551 = vpack.c.b16 %v548, %v547
        %v552 = vpack.c.b16 %v550, %v549
        %v556 = vsel %vm246, %v531, 0
        %558 = vmatprep.subr.bf16.mxu0 0
        %559 = vmatpush1.bf16.msra.mxu0 %v551
        %560 = vmatprep.subr.bf16.mxu0 0
        %561 = vmatpush1.bf16.msra.mxu0 %v552
        %562 = vmatprep.subr.bf16.mxu0 0
        %563 = vmatpush1.bf16.msra.mxu0 0
        %564 = vmatprep.subr.bf16.mxu0 0
        %565 = vmatpush1.bf16.msra.mxu0 0
        %566 = vmatprep.subr.bf16.mxu0 0
        %567 = vmatpush1.bf16.msra.mxu0 0
        %568 = vmatprep.subr.bf16.mxu0 0
        %569 = vmatpush1.bf16.msra.mxu0 0
        %570 = vmatprep.subr.bf16.mxu0 0
        %571 = vmatpush1.bf16.msra.mxu0 0
        %572 = vmatprep.subr.bf16.mxu0 0
        %573 = vmatpush1.bf16.msra.mxu0 0
        %574 = vmatprep.subr.bf16.mxu0 0
        %575 = vmatpush1.bf16.msra.mxu0 0
        %576 = vmatprep.subr.bf16.mxu0 0
        %577 = vmatpush1.bf16.msra.mxu0 0
        %578 = vmatprep.subr.bf16.mxu0 0
        %579 = vmatpush1.bf16.msra.mxu0 0
        %580 = vmatprep.subr.bf16.mxu0 0
        %581 = vmatpush1.bf16.msra.mxu0 0
        %582 = vmatprep.subr.bf16.mxu0 0
        %583 = vmatpush1.bf16.msra.mxu0 0
        %584 = vmatprep.subr.bf16.mxu0 0
        %585 = vmatpush1.bf16.msra.mxu0 0
        %586 = vmatprep.subr.bf16.mxu0 0
        %587 = vmatpush1.bf16.msra.mxu0 0
        %588 = vmatprep.subr.bf16.mxu0 0
        %589 = vmatpush1.bf16.msra.mxu0 0
        %590 = vmatprep.mubr.bf16.mxu0 0
        %591 = vmatmul.mubr.bf16.gmra.mrb[0].mxu0 %v556
        %v592 = vpop.f32.mrb[0].mxu0
        %v593 = vadd.f32 %v541, %v592
        %v594 = vpop.f32.mrb[0].mxu0
        %v595 = vpop.f32.mrb[0].mxu0
        %v596 = vpop.f32.mrb[0].mxu0
        %597 = vdwg.mxu0
        %598 = vst.msk [vmem:[%s215] sm:$0xff] %vm246, %v593
        %s599 = sand.u32 %s137, 1
        %s600 = scalar_lea.sflag [#allocation4], %s599
        %s601 = sand.u32 %s137, 1
        %s602 = smul.addr %s601, 8
        %s603 = scalar_lea.vmem [#allocation3], %s602
        // Predicated region
        $region41: #{masked_causal_attention.1} parent=39 // pred_check
          %p604 = pneg %p147
        $region42: #{masked_causal_attention.1} parent=39 // pred_check_branch
          %606 = sbr.rel (%p604) target = $region44
        $region43: #{masked_causal_attention.1} parent=39 // pred_region
          %s608 = ssub.s32 128, 128
          %609 = vsyncadd %s600, %s608
          %s610 = smul.addr %s19, 128
          %s611 = scalar_lea.hbm %s5, %s610
          %s613 = sshll.u32 %s603, 4
          %s614 = int_to_ptr.vmem [resolvable:$true] %s613
          %616 = dma.vmem_to_hbm [thread:$0]  %s614, 128, %s611, %s600
        $region44: #{masked_causal_attention.1} parent=39 // pred_fallthru
          _
      $region40: #{masked_causal_attention.1} parent=5 // pred_fallthru
        _
      %p617 = scmp.le.s32.totalorder 2, %s14
      // Predicated region
      $region45: #{masked_causal_attention.1} parent=5 // pred_check
        %p618 = pneg %p617
      $region46: #{masked_causal_attention.1} parent=5 // pred_check_branch
        %620 = sbr.rel (%p618) target = $region48
      $region47: #{masked_causal_attention.1} parent=5 // pred_region
        %s621 = ssub.s32 %s14, 2
        // Predicated region
        $region49: #{masked_causal_attention.1} parent=47 // pred_check
          %p622 = pneg %p153
        $region50: #{masked_causal_attention.1} parent=47 // pred_check_branch
          %624 = sbr.rel (%p622) target = $region52
        $region51: #{masked_causal_attention.1} parent=47 // pred_region
          %s625 = sand.u32 %s138, 1
          %s626 = scalar_lea.sflag [#allocation4], %s625
          %s627 = sand.u32 %s138, 1
          %s628 = smul.addr %s627, 8
          %s629 = scalar_lea.vmem [#allocation3], %s628
          %630 = dma.done %s626, 128
        $region52: #{masked_causal_attention.1} parent=47 // pred_fallthru
          _
      $region48: #{masked_causal_attention.1} parent=5 // pred_fallthru
        _
    $region6: #{masked_causal_attention.1} parent=1 // loop_footer
      %s18 = sadd.s32 1, %s14
    $region7: #{masked_causal_attention.1} parent=1 // loop_footer_branch
      %13 = sbr.rel target = $region3
    $region8: #{masked_causal_attention.1} parent=1 // loop_exit
      _
    %631 = vsyncpa [#allocation4], 1
    %s632 = scalar_lea.sflag [#allocation4], 1
    %633 = vsyncpa %s632, 1

</llo_original>
